<compile_context>
chip_gen: v7x
topology: tpu7x:2x2x1
jax: 0.10.0
libtpu: 0.0.40
codegen_flags: <defaults>
</compile_context>

<pallas_src>
import functools

import jax
import jax.numpy as jnp
from jax import lax
from jax.experimental import pallas as pl
from jax.experimental.pallas import tpu as pltpu


def _max_depth_conv_kernel(x_ref, tab_ref, mask_ref, o_ref, xp_ref, *, r, W):
    """One grid step: Cb input-channel planes -> the Cb*r output-channel planes that use them.

    x_ref   : (1, Cb, S)      f32 VMEM  input block, flattened spatial (S = H*W) on lanes
    tab_ref : (Cb, 8*r)       f32 VMEM  fused BN-scaled taps + BN shifts (8 values per copy j)
    mask_ref: (2, S)          f32 VMEM  row-boundary masks for the +-1 shifts along W
    o_ref   : (1, Cb, r*S)    f32 VMEM  the r output copies concatenated along the lane axis
    xp_ref  : (Cb, S + 2*W)   f32 VMEM  scratch: halo-padded copy of the input block
    """
    Cb = x_ref.shape[1]
    S = x_ref.shape[2]
    x = x_ref[0]                                     # (Cb, S)

    # Build the +-1 halo in VMEM (replaces the old wrapper-side HBM pad pass).  Borders are
    # rewritten every step, so the kernel keeps no cross-step state (megacore-safe).
    zeros_w = jnp.zeros((Cb, W), jnp.float32)
    xp_ref[:, 0:W] = zeros_w                         # zeros "above" row 0
    xp_ref[:, W + S:2 * W + S] = zeros_w             # zeros "below" row H-1
    xp_ref[:, W:W + S] = x

    # Shifted neighbours as static lane-offset slices of the padded scratch.
    x_hm1 = xp_ref[:, 0:S]                           # x[h-1, w]  (zeros for h == 0)
    x_hp1 = xp_ref[:, 2 * W:2 * W + S]               # x[h+1, w]  (zeros for h == H-1)
    x_wm1 = xp_ref[:, W - 1:W - 1 + S]               # x[h, w-1]  (needs w == 0 mask)
    x_wp1 = xp_ref[:, W + 1:W + 1 + S]               # x[h, w+1]  (needs w == W-1 mask)

    m = mask_ref[...]                                # (2, S)
    zero = jnp.zeros_like(x)
    x_wm1 = jnp.where(m[0:1] > 0.0, x_wm1, zero)     # kill wrap-around from previous row
    x_wp1 = jnp.where(m[1:2] > 0.0, x_wp1, zero)     # kill wrap-around from next row

    t = tab_ref[...]                                 # (Cb, 8*r), one load per step
    for j in range(r):                               # static unroll; r = oup // inp is small
        b = 8 * j
        # conv (3,1) and conv (1,3); taps already carry the fused BN scale, then BN shift.
        # (Cb, S) * (Cb, 1) broadcasts -> one VPU op covers all Cb channel rows at once.
        y1 = (x_hm1 * t[:, b + 0:b + 1] + x * t[:, b + 1:b + 2]
              + x_hp1 * t[:, b + 2:b + 3] + t[:, b + 6:b + 7])
        y2 = (x_wm1 * t[:, b + 3:b + 4] + x * t[:, b + 4:b + 5]
              + x_wp1 * t[:, b + 5:b + 6] + t[:, b + 7:b + 8])
        # Copy j lives at lanes [j*S, (j+1)*S) of the lane-dense output block.
        o_ref[0, :, j * S:(j + 1) * S] = jnp.maximum(y1, y2)


def _pick_channel_block(C, r, S, budget_bytes=8 << 20):
    """Largest channel block that divides C, is legal for (8,128) tiling, and fits the budget."""
    # Per input channel & step (f32): double-buffered in/out blocks + halo scratch + ~6 temps.
    per_c = 4 * S * (2 + 2 * r + 7)
    cb_max = max(1, budget_bytes // per_c)
    if C <= cb_max:
        return C                                     # full channel dim: always legal
    fits = [d for d in range(8, C + 1, 8) if C % d == 0 and d <= cb_max]
    if fits:
        return max(fits)
    legal = [d for d in range(8, C + 1, 8) if C % d == 0]
    return min(legal) if legal else C


def max_depth_conv(x, w1, w2, bn1, bn2, *, stride, eps=1e-5):
    """x: (N, inp, H, W) NCHW.  w1: (oup,1,3,1), w2: (oup,1,1,3).  Returns (N, oup, Ho, Wo)."""
    N, C, H, W = x.shape
    O = w1.shape[0]
    r = O // C
    assert r * C == O, "oup must be a multiple of inp (groups=inp)"
    S = H * W

    # Fuse BatchNorm (inference mode) into per-output-channel scaled taps + shifts.
    def fuse(p):
        scale = p["gamma"] / jnp.sqrt(p["var"] + eps)
        shift = p["beta"] - p["mean"] * scale
        return scale, shift

    s1, b1 = fuse(bn1)
    s2, b2 = fuse(bn2)
    w1t = w1[:, 0, :, 0].astype(jnp.float32) * s1[:, None]           # (O, 3) scaled H-taps
    w2t = w2[:, 0, 0, :].astype(jnp.float32) * s2[:, None]           # (O, 3) scaled W-taps
    per_o = jnp.concatenate([w1t, w2t, b1[:, None], b2[:, None]], axis=1)   # (O, 8)
    # Row c holds the 8 fused values of output channels c*r .. c*r+r-1 (copy j at cols 8j..8j+7).
    tab = per_o.reshape(C, 8 * r).astype(jnp.float32)

    # Row-boundary masks for the +-1 shifts along W (tiny, shared by every grid step).
    col = jnp.arange(S, dtype=jnp.int32) % W
    masks = jnp.stack([(col >= 1), (col <= W - 2)]).astype(jnp.float32)      # (2, S)

    # Contiguous-view reshape only: spatial flattened onto the lane axis, f32 compute
    # everywhere (safe on v5e; bf16 I/O left as a follow-up for v6e/v7x).
    x_flat = x.astype(jnp.float32).reshape(N, C, S)

    Cb = _pick_channel_block(C, r, S)
    assert C % Cb == 0
    grid = (N, C // Cb)

    kernel = functools.partial(_max_depth_conv_kernel, r=r, W=W)
    out = pl.pallas_call(
        kernel,
        out_shape=jax.ShapeDtypeStruct((N, C, r * S), jnp.float32),
        grid=grid,
        in_specs=[
            pl.BlockSpec((1, Cb, S), lambda n, b: (n, b, 0)),
            pl.BlockSpec((Cb, 8 * r), lambda n, b: (b, 0)),
            pl.BlockSpec((2, S), lambda n, b: (0, 0)),
        ],
        out_specs=pl.BlockSpec((1, Cb, r * S), lambda n, b: (n, b, 0)),
        scratch_shapes=[pltpu.VMEM((Cb, S + 2 * W), jnp.float32)],
        compiler_params=pltpu.CompilerParams(
            dimension_semantics=("parallel", "parallel"),
            vmem_limit_bytes=48 << 20),
    )(x_flat, tab, masks)

    # (N, C, r*S) -> (N, O, H, W) is a contiguous view (output channel o = c*r + j).
    out = out.reshape(N, O, H, W)
    if stride > 1:
        # TODO(synk): stride>1 subsamples the stride-1 result; a phase-aware kernel path that
        #             writes only the strided rows/cols would avoid the redundant compute.
        out = out[:, :, ::stride, ::stride]
    return out


def reference(x, w1, w2, bn1, bn2, stride, eps=1e-5):
    """Pure-JAX reference using lax grouped conv (matches PyTorch semantics)."""
    C = x.shape[1]
    dn = lax.conv_dimension_numbers(x.shape, w1.shape, ("NCHW", "OIHW", "NCHW"))
    y1 = lax.conv_general_dilated(
        x, w1, (stride, stride), ((1, 1), (0, 0)), dimension_numbers=dn,
        feature_group_count=C, precision=lax.Precision.HIGHEST)
    dn2 = lax.conv_dimension_numbers(x.shape, w2.shape, ("NCHW", "OIHW", "NCHW"))
    y2 = lax.conv_general_dilated(
        x, w2, (stride, stride), ((0, 0), (1, 1)), dimension_numbers=dn2,
        feature_group_count=C, precision=lax.Precision.HIGHEST)

    def bn(y, p):
        scale = p["gamma"] / jnp.sqrt(p["var"] + eps)
        shift = p["beta"] - p["mean"] * scale
        return y * scale.reshape(1, -1, 1, 1) + shift.reshape(1, -1, 1, 1)

    return jnp.maximum(bn(y1, bn1), bn(y2, bn2))


if __name__ == "__main__":
    N, inp, oup, H, W, stride = 2, 4, 8, 16, 16, 1
    keys = jax.random.split(jax.random.PRNGKey(0), 12)

    x = jax.random.normal(keys[0], (N, inp, H, W), jnp.float32)
    # Conv weights: (oup, inp/groups=1, kh, kw) for groups=inp.
    w1 = 0.5 * jax.random.normal(keys[1], (oup, 1, 3, 1), jnp.float32)
    w2 = 0.5 * jax.random.normal(keys[2], (oup, 1, 1, 3), jnp.float32)
    bn1 = dict(
        gamma=1.0 + 0.1 * jax.random.normal(keys[3], (oup,), jnp.float32),
        beta=0.1 * jax.random.normal(keys[4], (oup,), jnp.float32),
        mean=0.1 * jax.random.normal(keys[5], (oup,), jnp.float32),
        var=0.5 + jax.random.uniform(keys[6], (oup,), jnp.float32),
    )
    bn2 = dict(
        gamma=1.0 + 0.1 * jax.random.normal(keys[7], (oup,), jnp.float32),
        beta=0.1 * jax.random.normal(keys[8], (oup,), jnp.float32),
        mean=0.1 * jax.random.normal(keys[9], (oup,), jnp.float32),
        var=0.5 + jax.random.uniform(keys[10], (oup,), jnp.float32),
    )

    out = max_depth_conv(x, w1, w2, bn1, bn2, stride=stride)
    out = jax.block_until_ready(out)

    ref = jax.block_until_ready(reference(x, w1, w2, bn1, bn2, stride))
    assert out.shape == ref.shape == (N, oup, H, W), (out.shape, ref.shape)
    assert jnp.max(jnp.abs(out - ref)) < 1e-4, float(jnp.max(jnp.abs(out - ref)))

    print("KERNEL_OK")
</pallas_src>

<mosaic_0001>
module attributes {stable_mosaic.version = 11 : i64} {
  func.func @_max_depth_conv_kernel(%arg0: i32, %arg1: i32, %arg2: memref<1x4x256xf32, #tpu.memory_space<vmem>>, %arg3: memref<4x16xf32, #tpu.memory_space<vmem>>, %arg4: memref<2x256xf32, #tpu.memory_space<vmem>>, %arg5: memref<1x4x512xf32, #tpu.memory_space<vmem>>, %arg6: memref<4x288xf32, #tpu.memory_space<vmem>>) attributes {dimension_semantics = [#tpu.dimension_semantics<parallel>, #tpu.dimension_semantics<parallel>], iteration_bounds = array<i64: 2, 1>, scalar_prefetch = 0 : i64, scratch_operands = 1 : i64, tpu.core_type = #tpu.core_type<tc>, window_params = [{transform_indices = @transform_0, window_bounds = array<i64: 1, 4, 256>}, {transform_indices = @transform_1, window_bounds = array<i64: 4, 16>}, {pipeline_mode = #tpu.pipeline_mode<synchronous>, transform_indices = @transform_2, window_bounds = array<i64: 2, 256>}, {transform_indices = @transform_3, window_bounds = array<i64: 1, 4, 512>}]} {
    %c0 = arith.constant 0 : index
    %c0_0 = arith.constant 0 : index
    %c0_1 = arith.constant 0 : index
    %0 = vector.load %arg2[%c0, %c0_0, %c0_1] : memref<1x4x256xf32, #tpu.memory_space<vmem>>, vector<1x4x256xf32>
    %1 = vector.shape_cast %0 : vector<1x4x256xf32> to vector<4x256xf32>
    %cst = arith.constant 0.000000e+00 : f32
    %2 = vector.broadcast %cst : f32 to vector<4x16xf32>
    %c0_2 = arith.constant 0 : index
    %c0_3 = arith.constant 0 : index
    %3 = vector.load %arg6[%c0_2, %c0_3] : memref<4x288xf32, #tpu.memory_space<vmem>>, vector<4x16xf32>
    tpu.vector_store %arg6[%c0_2, %c0_3], %2 {strides = array<i32>} : memref<4x288xf32, #tpu.memory_space<vmem>>, vector<4x16xf32>,
    %c0_4 = arith.constant 0 : index
    %c272 = arith.constant 272 : index
    %4 = vector.load %arg6[%c0_4, %c272] : memref<4x288xf32, #tpu.memory_space<vmem>>, vector<4x16xf32>
    tpu.vector_store %arg6[%c0_4, %c272], %2 {strides = array<i32>} : memref<4x288xf32, #tpu.memory_space<vmem>>, vector<4x16xf32>,
    %c0_5 = arith.constant 0 : index
    %c16 = arith.constant 16 : index
    %5 = vector.load %arg6[%c0_5, %c16] : memref<4x288xf32, #tpu.memory_space<vmem>>, vector<4x256xf32>
    tpu.vector_store %arg6[%c0_5, %c16], %1 {strides = array<i32>} : memref<4x288xf32, #tpu.memory_space<vmem>>, vector<4x256xf32>,
    %c0_6 = arith.constant 0 : index
    %c0_7 = arith.constant 0 : index
    %6 = vector.load %arg6[%c0_6, %c0_7] : memref<4x288xf32, #tpu.memory_space<vmem>>, vector<4x256xf32>
    %c0_8 = arith.constant 0 : index
    %c32 = arith.constant 32 : index
    %7 = vector.load %arg6[%c0_8, %c32] : memref<4x288xf32, #tpu.memory_space<vmem>>, vector<4x256xf32>
    %c0_9 = arith.constant 0 : index
    %c15 = arith.constant 15 : index
    %8 = vector.load %arg6[%c0_9, %c15] : memref<4x288xf32, #tpu.memory_space<vmem>>, vector<4x256xf32>
    %c0_10 = arith.constant 0 : index
    %c17 = arith.constant 17 : index
    %9 = vector.load %arg6[%c0_10, %c17] : memref<4x288xf32, #tpu.memory_space<vmem>>, vector<4x256xf32>
    %c0_11 = arith.constant 0 : index
    %c0_12 = arith.constant 0 : index
    %10 = vector.load %arg4[%c0_11, %c0_12] : memref<2x256xf32, #tpu.memory_space<vmem>>, vector<2x256xf32>
    %cst_13 = arith.constant 0.000000e+00 : f32
    %11 = vector.broadcast %cst_13 : f32 to vector<4x256xf32>
    %12 = vector.extract_strided_slice %10 {offsets = [0, 0], sizes = [1, 256], strides = [1, 1]} : vector<2x256xf32> to vector<1x256xf32>
    %cst_14 = arith.constant 0.000000e+00 : f32
    %13 = vector.broadcast %cst_14 : f32 to vector<1x256xf32>
    %14 = arith.cmpf ogt, %12, %13 : vector<1x256xf32>
    %15 = vector.shape_cast %14 : vector<1x256xi1> to vector<1x256xi1>
    %16 = vector.broadcast %15 : vector<1x256xi1> to vector<4x256xi1>
    %17 = arith.select %16, %8, %11 : vector<4x256xi1>, vector<4x256xf32>
    %18 = vector.extract_strided_slice %10 {offsets = [1, 0], sizes = [1, 256], strides = [1, 1]} : vector<2x256xf32> to vector<1x256xf32>
    %cst_15 = arith.constant 0.000000e+00 : f32
    %19 = vector.broadcast %cst_15 : f32 to vector<1x256xf32>
    %20 = arith.cmpf ogt, %18, %19 : vector<1x256xf32>
    %21 = vector.shape_cast %20 : vector<1x256xi1> to vector<1x256xi1>
    %22 = vector.broadcast %21 : vector<1x256xi1> to vector<4x256xi1>
    %23 = arith.select %22, %9, %11 : vector<4x256xi1>, vector<4x256xf32>
    %c0_16 = arith.constant 0 : index
    %c0_17 = arith.constant 0 : index
    %24 = vector.load %arg3[%c0_16, %c0_17] : memref<4x16xf32, #tpu.memory_space<vmem>>, vector<4x16xf32>
    %25 = vector.extract_strided_slice %24 {offsets = [0, 0], sizes = [4, 1], strides = [1, 1]} : vector<4x16xf32> to vector<4x1xf32>
    %26 = vector.broadcast %25 : vector<4x1xf32> to vector<4x256xf32>
    %27 = arith.mulf %6, %26 : vector<4x256xf32>
    %28 = vector.extract_strided_slice %24 {offsets = [0, 1], sizes = [4, 1], strides = [1, 1]} : vector<4x16xf32> to vector<4x1xf32>
    %29 = vector.broadcast %28 : vector<4x1xf32> to vector<4x256xf32>
    %30 = arith.mulf %1, %29 : vector<4x256xf32>
    %31 = arith.addf %27, %30 : vector<4x256xf32>
    %32 = vector.extract_strided_slice %24 {offsets = [0, 2], sizes = [4, 1], strides = [1, 1]} : vector<4x16xf32> to vector<4x1xf32>
    %33 = vector.broadcast %32 : vector<4x1xf32> to vector<4x256xf32>
    %34 = arith.mulf %7, %33 : vector<4x256xf32>
    %35 = arith.addf %31, %34 : vector<4x256xf32>
    %36 = vector.extract_strided_slice %24 {offsets = [0, 6], sizes = [4, 1], strides = [1, 1]} : vector<4x16xf32> to vector<4x1xf32>
    %37 = vector.broadcast %36 : vector<4x1xf32> to vector<4x256xf32>
    %38 = arith.addf %35, %37 : vector<4x256xf32>
    %39 = vector.extract_strided_slice %24 {offsets = [0, 3], sizes = [4, 1], strides = [1, 1]} : vector<4x16xf32> to vector<4x1xf32>
    %40 = vector.broadcast %39 : vector<4x1xf32> to vector<4x256xf32>
    %41 = arith.mulf %17, %40 : vector<4x256xf32>
    %42 = vector.extract_strided_slice %24 {offsets = [0, 4], sizes = [4, 1], strides = [1, 1]} : vector<4x16xf32> to vector<4x1xf32>
    %43 = vector.broadcast %42 : vector<4x1xf32> to vector<4x256xf32>
    %44 = arith.mulf %1, %43 : vector<4x256xf32>
    %45 = arith.addf %41, %44 : vector<4x256xf32>
    %46 = vector.extract_strided_slice %24 {offsets = [0, 5], sizes = [4, 1], strides = [1, 1]} : vector<4x16xf32> to vector<4x1xf32>
    %47 = vector.broadcast %46 : vector<4x1xf32> to vector<4x256xf32>
    %48 = arith.mulf %23, %47 : vector<4x256xf32>
    %49 = arith.addf %45, %48 : vector<4x256xf32>
    %50 = vector.extract_strided_slice %24 {offsets = [0, 7], sizes = [4, 1], strides = [1, 1]} : vector<4x16xf32> to vector<4x1xf32>
    %51 = vector.broadcast %50 : vector<4x1xf32> to vector<4x256xf32>
    %52 = arith.addf %49, %51 : vector<4x256xf32>
    %53 = arith.maximumf %38, %52 : vector<4x256xf32>
    %c0_18 = arith.constant 0 : index
    %c0_19 = arith.constant 0 : index
    %c0_20 = arith.constant 0 : index
    %54 = vector.load %arg5[%c0_18, %c0_19, %c0_20] : memref<1x4x512xf32, #tpu.memory_space<vmem>>, vector<1x4x256xf32>
    %55 = vector.shape_cast %54 : vector<1x4x256xf32> to vector<4x256xf32>
    %56 = vector.shape_cast %53 : vector<4x256xf32> to vector<1x4x256xf32>
    tpu.vector_store %arg5[%c0_18, %c0_19, %c0_20], %56 {strides = array<i32>} : memref<1x4x512xf32, #tpu.memory_space<vmem>>, vector<1x4x256xf32>,
    %57 = vector.extract_strided_slice %24 {offsets = [0, 8], sizes = [4, 1], strides = [1, 1]} : vector<4x16xf32> to vector<4x1xf32>
    %58 = vector.broadcast %57 : vector<4x1xf32> to vector<4x256xf32>
    %59 = arith.mulf %6, %58 : vector<4x256xf32>
    %60 = vector.extract_strided_slice %24 {offsets = [0, 9], sizes = [4, 1], strides = [1, 1]} : vector<4x16xf32> to vector<4x1xf32>
    %61 = vector.broadcast %60 : vector<4x1xf32> to vector<4x256xf32>
    %62 = arith.mulf %1, %61 : vector<4x256xf32>
    %63 = arith.addf %59, %62 : vector<4x256xf32>
    %64 = vector.extract_strided_slice %24 {offsets = [0, 10], sizes = [4, 1], strides = [1, 1]} : vector<4x16xf32> to vector<4x1xf32>
    %65 = vector.broadcast %64 : vector<4x1xf32> to vector<4x256xf32>
    %66 = arith.mulf %7, %65 : vector<4x256xf32>
    %67 = arith.addf %63, %66 : vector<4x256xf32>
    %68 = vector.extract_strided_slice %24 {offsets = [0, 14], sizes = [4, 1], strides = [1, 1]} : vector<4x16xf32> to vector<4x1xf32>
    %69 = vector.broadcast %68 : vector<4x1xf32> to vector<4x256xf32>
    %70 = arith.addf %67, %69 : vector<4x256xf32>
    %71 = vector.extract_strided_slice %24 {offsets = [0, 11], sizes = [4, 1], strides = [1, 1]} : vector<4x16xf32> to vector<4x1xf32>
    %72 = vector.broadcast %71 : vector<4x1xf32> to vector<4x256xf32>
    %73 = arith.mulf %17, %72 : vector<4x256xf32>
    %74 = vector.extract_strided_slice %24 {offsets = [0, 12], sizes = [4, 1], strides = [1, 1]} : vector<4x16xf32> to vector<4x1xf32>
    %75 = vector.broadcast %74 : vector<4x1xf32> to vector<4x256xf32>
    %76 = arith.mulf %1, %75 : vector<4x256xf32>
    %77 = arith.addf %73, %76 : vector<4x256xf32>
    %78 = vector.extract_strided_slice %24 {offsets = [0, 13], sizes = [4, 1], strides = [1, 1]} : vector<4x16xf32> to vector<4x1xf32>
    %79 = vector.broadcast %78 : vector<4x1xf32> to vector<4x256xf32>
    %80 = arith.mulf %23, %79 : vector<4x256xf32>
    %81 = arith.addf %77, %80 : vector<4x256xf32>
    %82 = vector.extract_strided_slice %24 {offsets = [0, 15], sizes = [4, 1], strides = [1, 1]} : vector<4x16xf32> to vector<4x1xf32>
    %83 = vector.broadcast %82 : vector<4x1xf32> to vector<4x256xf32>
    %84 = arith.addf %81, %83 : vector<4x256xf32>
    %85 = arith.maximumf %70, %84 : vector<4x256xf32>
    %c0_21 = arith.constant 0 : index
    %c0_22 = arith.constant 0 : index
    %c256 = arith.constant 256 : index
    %86 = vector.load %arg5[%c0_21, %c0_22, %c256] : memref<1x4x512xf32, #tpu.memory_space<vmem>>, vector<1x4x256xf32>
    %87 = vector.shape_cast %86 : vector<1x4x256xf32> to vector<4x256xf32>
    %88 = vector.shape_cast %85 : vector<4x256xf32> to vector<1x4x256xf32>
    tpu.vector_store %arg5[%c0_21, %c0_22, %c256], %88 {strides = array<i32>} : memref<1x4x512xf32, #tpu.memory_space<vmem>>, vector<1x4x256xf32>,
    return
  }
  func.func @transform_0(%arg0: i32, %arg1: i32) -> (i32, i32, i32) {
    %c0_i32 = arith.constant 0 : i32
    %c0_i32_0 = arith.constant 0 : i32
    return %arg0, %arg1, %c0_i32 : i32, i32, i32
  }
  func.func @transform_1(%arg0: i32, %arg1: i32) -> (i32, i32) {
    %c0_i32 = arith.constant 0 : i32
    %c0_i32_0 = arith.constant 0 : i32
    return %arg1, %c0_i32 : i32, i32
  }
  func.func @transform_2(%arg0: i32, %arg1: i32) -> (i32, i32) {
    %c0_i32 = arith.constant 0 : i32
    %c0_i32_0 = arith.constant 0 : i32
    %c0_i32_1 = arith.constant 0 : i32
    return %c0_i32, %c0_i32_0 : i32, i32
  }
  func.func @transform_3(%arg0: i32, %arg1: i32) -> (i32, i32, i32) {
    %c0_i32 = arith.constant 0 : i32
    %c0_i32_0 = arith.constant 0 : i32
    return %arg0, %arg1, %c0_i32 : i32, i32, i32
  }
}

</mosaic_0001>

<llo_original>
// kernel: tpu_custom_call.1
$region0: #{tpu_custom_call.1}
  #allocation0 [shape = 'u32[]', space=smem, size = 0x4, offset = 0x4, fixed_abs, tag = 'smem constant byte address 0x4 - core index']
  #allocation1 [shape = 'u32[144,128]{1,0:T(1,128)}', space=vmem, size = 0x12000, scoped, tag = 'internal scratch']
  #allocation2 [shape = 'f32[4,288]{1,0:T(4,128)}', space=vmem, size = 0x1800, scoped, tag = 'scratch operand']
  %s0 = inlined_call_operand.hbm [shape: f32[2,4,256], index: 0, kind: input, shape index: {}]
  %s1 = inlined_call_operand.hbm [shape: f32[4,16], index: 1, kind: input, shape index: {}]
  %s2 = inlined_call_operand.vmem [shape: f32[2,256], index: 2, kind: input, shape index: {}]
  %s3 = inlined_call_operand.hbm [shape: f32[2,4,512], index: 3, kind: output, shape index: {}]
  %s4 = sld [smem:[#allocation0]]
  $region53: #{tpu_custom_call.1} parent=0
    _
  %s6 = ssub.s32 1, %s4
  %s7 = scalar_select 0, %s6, %s4
  $region1: #{tpu_custom_call.1} parent=0
    #allocation3 [shape = 'u8[8192]{0}', space=vmem, size = 0x2000, scoped, tag = 'input window, operand 0']
    #allocation4 [shape = 's32[2]{0}', space=sflag, size = 0x8, scoped, tag = 'scoped memory for tpu_custom_call.1']
    #allocation5 [shape = 's32[2]{0}', space=sflag, size = 0x8, scoped, tag = 'scoped memory for tpu_custom_call.1']
    #allocation6 [shape = 'u8[2048]{0}', space=vmem, size = 0x800, scoped, tag = 'input window, operand 1, single buffered']
    #allocation7 [shape = 's32[1]{0}', space=sflag, size = 0x4, scoped, tag = 'scoped memory for tpu_custom_call.1']
    #allocation8 [shape = 'u8[16384]{0}', space=vmem, size = 0x4000, scoped, tag = 'output window, operand 0']
    %8 = vsyncpa [#allocation4], 0
    %s9 = scalar_lea.sflag [#allocation4], 1
    %10 = vsyncpa %s9, 0
    %11 = vsyncpa [#allocation7], 0
    %12 = vsyncpa [#allocation5], 0
    %s13 = scalar_lea.sflag [#allocation5], 1
    %14 = vsyncpa %s13, 0
    loop: start=0, step=1, limit=4
    $region2: #{tpu_custom_call.1} parent=1 // loop_pre_header
      _
    $region3: #{tpu_custom_call.1} parent=1 // loop_header
      %s16 = sphi 0, %s20
      %p17 = scmp.ge.s32.totalorder %s16, 4
      %s23 = sphi 0, %s35
      %s24 = sphi 0, %s31
      %s25 = sphi 0, %s23
      %s26 = sphi 0, %s24
      %s27 = sphi 0, %s25
      %s28 = sphi 0, %s26
      %s40 = sphi 0, %s42
      %s43 = sphi 0, %s40
      %s44 = sphi 0, %s43
      %s60 = sphi 0, %s44
      %s66 = sphi 0, %s68
      %s69 = sphi 0, %s66
      %s70 = sphi 0, %s69
      %s86 = sphi 0, %s70
      %s90 = sphi 0, %s90
      %s92 = sphi 0, %s90
      %s93 = sphi 0, %s92
      %s107 = sphi 0, %s93
      %s115 = sphi 0, %s117
      %s118 = sphi 0, %s115
      %s119 = sphi 0, %s118
      %s135 = sphi 0, %s119
    $region4: #{tpu_custom_call.1} parent=1 // loop_header_branch
      %19 = sbr.rel (%p17) target = $region8
    $region5: #{tpu_custom_call.1} parent=1 // loop_body
      %s21 = ssub.s32 %s16, 1
      %s22 = ssub.s32 %s16, 2
      %s29 = sadd.s32 1, %s24
      %p30 = scmp.ge.s32.totalorder %s29, 1
      %s31 = scalar_select %p30, 0, %s29
      %s32 = sadd.s32 1, %s23
      %s33 = scalar_select %p30, %s32, %s23
      %p34 = scmp.ge.s32.totalorder %s33, 2
      %s35 = scalar_select %p34, 0, %s33
      %s36 = ssub.s32 %s23, %s35
      %s37 = ssub.s32 %s24, %s31
      %s38 = sor.u32 %s36, %s37
      %p39 = scmp.eq.s32.totalorder %s38, 0
      %s41 = sadd.s32 %s40, 1
      %s42 = scalar_select %p39, %s40, %s41
      %p45 = pneg %p39
      %p46 = scmp.eq.s32.totalorder %s16, 1
      %p47 = por %p45, %p46
      %p48 = scmp.ne.s32.totalorder %s40, %s43
      %p49 = scmp.eq.s32.totalorder %s16, 0
      %p50 = por %p48, %p49
      %p51 = scmp.ne.s32.totalorder %s40, %s43
      %p52 = scmp.eq.s32.totalorder %s21, 1
      %p53 = por %p51, %p52
      %p54 = scmp.ne.s32.totalorder %s43, %s44
      %p55 = scmp.eq.s32.totalorder %s21, 0
      %p56 = por %p54, %p55
      %p57 = scmp.ne.s32.totalorder %s43, %s44
      %p58 = scmp.eq.s32.totalorder %s22, 1
      %p59 = por %p57, %p58
      %p61 = scmp.ne.s32.totalorder %s44, %s60
      %p62 = scmp.eq.s32.totalorder %s22, 0
      %p63 = por %p61, %p62
      %s64 = ssub.s32 %s24, %s31
      %p65 = scmp.eq.s32.totalorder %s64, 0
      %s67 = sadd.s32 %s66, 1
      %s68 = scalar_select %p65, %s66, %s67
      %p71 = pneg %p65
      %p72 = scmp.eq.s32.totalorder %s16, 1
      %p73 = por %p71, %p72
      %p74 = scmp.ne.s32.totalorder %s66, %s69
      %p75 = scmp.eq.s32.totalorder %s16, 0
      %p76 = por %p74, %p75
      %p77 = scmp.ne.s32.totalorder %s66, %s69
      %p78 = scmp.eq.s32.totalorder %s21, 1
      %p79 = por %p77, %p78
      %p80 = scmp.ne.s32.totalorder %s69, %s70
      %p81 = scmp.eq.s32.totalorder %s21, 0
      %p82 = por %p80, %p81
      %p83 = scmp.ne.s32.totalorder %s69, %s70
      %p84 = scmp.eq.s32.totalorder %s22, 1
      %p85 = por %p83, %p84
      %p87 = scmp.ne.s32.totalorder %s70, %s86
      %p88 = scmp.eq.s32.totalorder %s22, 0
      %p89 = por %p87, %p88
      %s91 = sadd.s32 %s90, 1
      %p94 = scmp.eq.s32.totalorder %s16, 1
      %p95 = scmp.ne.s32.totalorder %s90, %s92
      %p96 = scmp.eq.s32.totalorder %s16, 0
      %p97 = por %p95, %p96
      %p98 = scmp.ne.s32.totalorder %s90, %s92
      %p99 = scmp.eq.s32.totalorder %s21, 1
      %p100 = por %p98, %p99
      %p101 = scmp.ne.s32.totalorder %s92, %s93
      %p102 = scmp.eq.s32.totalorder %s21, 0
      %p103 = por %p101, %p102
      %p104 = scmp.ne.s32.totalorder %s92, %s93
      %p105 = scmp.eq.s32.totalorder %s22, 1
      %p106 = por %p104, %p105
      %p108 = scmp.ne.s32.totalorder %s93, %s107
      %p109 = scmp.eq.s32.totalorder %s22, 0
      %p110 = por %p108, %p109
      %s111 = ssub.s32 %s23, %s35
      %s112 = ssub.s32 %s24, %s31
      %s113 = sor.u32 %s111, %s112
      %p114 = scmp.eq.s32.totalorder %s113, 0
      %s116 = sadd.s32 %s115, 1
      %s117 = scalar_select %p114, %s115, %s116
      %p120 = pneg %p114
      %p121 = scmp.eq.s32.totalorder %s16, 1
      %p122 = por %p120, %p121
      %p123 = scmp.ne.s32.totalorder %s115, %s118
      %p124 = scmp.eq.s32.totalorder %s16, 0
      %p125 = por %p123, %p124
      %p126 = scmp.ne.s32.totalorder %s115, %s118
      %p127 = scmp.eq.s32.totalorder %s21, 1
      %p128 = por %p126, %p127
      %p129 = scmp.ne.s32.totalorder %s118, %s119
      %p130 = scmp.eq.s32.totalorder %s21, 0
      %p131 = por %p129, %p130
      %p132 = scmp.ne.s32.totalorder %s118, %s119
      %p133 = scmp.eq.s32.totalorder %s22, 1
      %p134 = por %p132, %p133
      %p136 = scmp.ne.s32.totalorder %s119, %s135
      %p137 = scmp.eq.s32.totalorder %s22, 0
      %p138 = por %p136, %p137
      %p139 = scmp.le.s32.totalorder 1, %s16
      %p140 = scmp.lt.s32.totalorder %s16, 3
      %p141 = pnand %p139, %p140
      %p142 = pneg %p141
      // Predicated region
      $region9: #{tpu_custom_call.1} parent=5 // pred_check
        _
      $region10: #{tpu_custom_call.1} parent=5 // pred_check_branch
        %144 = sbr.rel (%p141) target = $region12
      $region11: #{tpu_custom_call.1} parent=5 // pred_region
        %s145 = ssub.s32 %s16, 1
        // Predicated region
        $region13: #{tpu_custom_call.1} parent=11 // pred_check
          %p146 = pneg %p82
        $region14: #{tpu_custom_call.1} parent=11 // pred_check_branch
          %148 = sbr.rel (%p146) target = $region16
        $region15: #{tpu_custom_call.1} parent=11 // pred_region
          %s150 = ssub.s32 64, 64
          %151 = vsyncadd [#allocation7], %s150
          %s152 = smul.addr %s26, 64
          %s153 = scalar_lea.hbm %s1, %s152
          %s155 = sshll.u32 [#allocation6], 4
          %s156 = int_to_ptr.vmem [resolvable:$true] %s155
          %158 = dma.hbm_to_vmem [thread:$0]  %s153, 64, %s156, [#allocation7]
        $region16: #{tpu_custom_call.1} parent=11 // pred_fallthru
          _
        // Predicated region
        $region17: #{tpu_custom_call.1} parent=11 // pred_check
          %p159 = pneg %p103
        $region18: #{tpu_custom_call.1} parent=11 // pred_check_branch
          %161 = sbr.rel (%p159) target = $region20
        $region19: #{tpu_custom_call.1} parent=11 // pred_region
          _
        $region20: #{tpu_custom_call.1} parent=11 // pred_fallthru
          _
      $region12: #{tpu_custom_call.1} parent=5 // pred_fallthru
        _
      %p162 = scmp.lt.s32.totalorder %s16, 2
      // Predicated region
      $region21: #{tpu_custom_call.1} parent=5 // pred_check
        %p163 = pneg %p162
      $region22: #{tpu_custom_call.1} parent=5 // pred_check_branch
        %165 = sbr.rel (%p163) target = $region24
      $region23: #{tpu_custom_call.1} parent=5 // pred_region
        // Predicated region
        $region25: #{tpu_custom_call.1} parent=23 // pred_check
          %p166 = pneg %p50
        $region26: #{tpu_custom_call.1} parent=23 // pred_check_branch
          %168 = sbr.rel (%p166) target = $region28
        $region27: #{tpu_custom_call.1} parent=23 // pred_region
          %s169 = sand.u32 %s40, 1
          %s170 = scalar_lea.sflag [#allocation4], %s169
          %s171 = sand.u32 %s40, 1
          %s172 = smul.addr %s171, 8
          %s173 = scalar_lea.vmem [#allocation3], %s172
          %s175 = ssub.s32 128, 128
          %176 = vsyncadd %s170, %s175
          %s177 = smul.addr %s24, 2
          %s178 = smul.addr %s23, 2
          %s179 = sadd.s32 %s177, %s178
          %s180 = smul.addr %s179, 64
          %s181 = scalar_lea.hbm %s0, %s180
          %s183 = sshll.u32 %s173, 4
          %s184 = int_to_ptr.vmem [resolvable:$true] %s183
          %186 = dma.hbm_to_vmem [thread:$0]  %s181, 128, %s184, %s170
        $region28: #{tpu_custom_call.1} parent=23 // pred_fallthru
          _
      $region24: #{tpu_custom_call.1} parent=5 // pred_fallthru
        _
      %p187 = scmp.le.s32.totalorder 1, %s16
      %p188 = scmp.lt.s32.totalorder %s16, 3
      %p189 = pnand %p187, %p188
      %p190 = pneg %p189
      // Predicated region
      $region29: #{tpu_custom_call.1} parent=5 // pred_check
        _
      $region30: #{tpu_custom_call.1} parent=5 // pred_check_branch
        %192 = sbr.rel (%p189) target = $region32
      $region31: #{tpu_custom_call.1} parent=5 // pred_region
        %s193 = ssub.s32 %s16, 1
        %s194 = sand.u32 %s43, 1
        %s195 = scalar_lea.sflag [#allocation4], %s194
        %s196 = sand.u32 %s43, 1
        %s197 = smul.addr %s196, 8
        %s198 = scalar_lea.vmem [#allocation3], %s197
        // Predicated region
        $region33: #{tpu_custom_call.1} parent=31 // pred_check
          %p199 = pneg %p56
        $region34: #{tpu_custom_call.1} parent=31 // pred_check_branch
          %201 = sbr.rel (%p199) target = $region36
        $region35: #{tpu_custom_call.1} parent=31 // pred_region
          %202 = dma.done %s195, 128
        $region36: #{tpu_custom_call.1} parent=31 // pred_fallthru
          _
        // Predicated region
        $region37: #{tpu_custom_call.1} parent=31 // pred_check
          %p203 = pneg %p82
        $region38: #{tpu_custom_call.1} parent=31 // pred_check_branch
          %205 = sbr.rel (%p203) target = $region40
        $region39: #{tpu_custom_call.1} parent=31 // pred_region
          %206 = dma.done [#allocation7], 64
        $region40: #{tpu_custom_call.1} parent=31 // pred_fallthru
          _
        %s207 = sand.u32 %s43, 1
        %s208 = scalar_lea.sflag [#allocation4], %s207
        %s209 = sand.u32 %s43, 1
        %s210 = smul.addr %s209, 8
        %s211 = scalar_lea.vmem [#allocation3], %s210
        %p212 = pneg %p56
        %p213 = pneg %p53
        %p214 = pneg %p82
        %p215 = pneg %p79
        %p216 = pneg %p103
        %p217 = pneg %p100
        %p218 = pneg %p131
        %p219 = pneg %p128
        %s220 = sand.u32 %s118, 1
        %s221 = scalar_lea.sflag [#allocation5], %s220
        %s222 = sand.u32 %s118, 1
        %s223 = smul.addr %s222, 16
        %s224 = scalar_lea.vmem [#allocation8], %s223
        %v225 = vld [vmem:[%s198] sm:$0xff]
        %vm226 = vcmask 125952
        %227 = vst.msk [vmem:[#allocation2] sm:$0xf] %vm226, 0.0
        %vm228 = vcmask 257152
        %229 = vst.msk [vmem:[#allocation2 + $0x8] sm:$0xf] %vm228, 0.0
        %231 = vrot.lane.b32.xlu0 %v225, 16
        %v232 = vpop.permute.xlu0 %231
        %v233 = vrot.slane %v232, 4
        %vm234 = vcmask 130048
        %v235 = vsel %vm234, %v233, %v232
        %vm238 = vcmask 1043584
        %vm239 = vcmask 1047556
        %vm240 = vmor %vm239, %vm238
        %241 = vst.msk [vmem:[#allocation2] sm:$0xff] %vm240, %v235
        %242 = vst.msk [vmem:[#allocation2 + $0x8] sm:$0xf] %vm226, %v233
        %v243 = vld [vmem:[#allocation2] sm:$0xff]
        %v244 = vld [vmem:[#allocation2 + $0x8] sm:$0xf]
        %v245 = vld [vmem:[%s2] sm:$0xf]
        %vm246 = vcmp.gt.f32.partialorder %v245, 0.0
        %v247 = vsel %vm246, 1, 0
        %v248 = vlaneseq
        %v249 = vshrl.u32 %v248, 7
        %v250 = vsub.s32 0, %v249
        %v251 = vrot.slane %v247, %v250
        %v252 = vlaneseq
        %v253 = vshrl.u32 %v252, 7
        %v254 = vsub.s32 2, %v253
        %v255 = vrot.slane %v247, %v254
        %v256 = vlaneseq
        %v257 = vshrl.u32 %v256, 7
        %v258 = vsub.s32 0, %v257
        %v259 = vrot.slane %v251, %v258
        %v260 = vlaneseq
        %v261 = vshrl.u32 %v260, 7
        %v262 = vsub.s32 0, %v261
        %v263 = vrot.slane %v255, %v262
        %vm264 = vcmp.eq.s32.totalorder %v259, 1
        %vm265 = vcmp.eq.s32.totalorder %v263, 1
        %v268 = vcombine.high %v243, %v243
        %269 = vrot.lane.b32.xlu0 %v243, 113
        %v270 = vpop.permute.xlu0 %269
        %271 = vrot.lane.b32.xlu0 %v268, 113
        %v272 = vpop.permute.xlu0 %271
        %273 = vrot.lane.b32.xlu0 %v244, 113
        %v274 = vpop.permute.xlu0 %273
        %vm275 = vcmask 924672
        %v276 = vsel %vm275, %v270, %v272
        %v277 = vsel %vm275, %v272, %v274
        %v280 = vsel %vm264, %v276, 0.0
        %v281 = vsel %vm265, %v277, 0.0
        %v282 = vlaneseq
        %v283 = vshrl.u32 %v282, 7
        %v284 = vsub.s32 1, %v283
        %v285 = vrot.slane %v247, %v284
        %v286 = vlaneseq
        %v287 = vshrl.u32 %v286, 7
        %v288 = vsub.s32 3, %v287
        %v289 = vrot.slane %v247, %v288
        %v290 = vlaneseq
        %v291 = vshrl.u32 %v290, 7
        %v292 = vsub.s32 1, %v291
        %v293 = vrot.slane %v285, %v292
        %v294 = vlaneseq
        %v295 = vshrl.u32 %v294, 7
        %v296 = vsub.s32 1, %v295
        %v297 = vrot.slane %v289, %v296
        %vm298 = vcmp.eq.s32.totalorder %v293, 1
        %vm299 = vcmp.eq.s32.totalorder %v297, 1
        %300 = vrot.lane.b32.xlu0 %v243, 111
        %v301 = vpop.permute.xlu0 %300
        %302 = vrot.lane.b32.xlu0 %v268, 111
        %v303 = vpop.permute.xlu0 %302
        %304 = vrot.lane.b32.xlu0 %v244, 111
        %v305 = vpop.permute.xlu0 %304
        %vm306 = vcmask 908288
        %v307 = vsel %vm306, %v301, %v303
        %v308 = vsel %vm306, %v303, %v305
        %v311 = vsel %vm298, %v307, 0.0
        %v312 = vsel %vm299, %v308, 0.0
        %v313 = vld [vmem:[#allocation6] sm:$0xf]
        %315 = vset.pattern.permute.xlu0 0
        %316 = vperm.xlu0 %315, %v313
        %v317 = vpop.permute.xlu0 %316
        %v319 = vunpack.c.l.s4 839922192
        %v320 = vunpack.c.0.s8 %v319
        %v321 = vlaneseq
        %v322 = vshrl.u32 %v321, 7
        %v323 = vsub.s32 %v320, %v322
        %v324 = vrot.slane %v317, %v323
        %v326 = vmul.f32 %v243, %v324
        %327 = vset.pattern.permute.xlu0 1
        %328 = vperm.xlu0 %327, %v313
        %v329 = vpop.permute.xlu0 %328
        %v331 = vunpack.c.l.s4 839922192
        %v332 = vunpack.c.0.s8 %v331
        %v333 = vlaneseq
        %v334 = vshrl.u32 %v333, 7
        %v335 = vsub.s32 %v332, %v334
        %v336 = vrot.slane %v329, %v335
        %v338 = vmul.f32 %v225, %v336
        %v339 = vadd.f32 %v326, %v338
        %340 = vset.pattern.permute.xlu0 2
        %341 = vperm.xlu0 %340, %v313
        %v342 = vpop.permute.xlu0 %341
        %v344 = vunpack.c.l.s4 839922192
        %v345 = vunpack.c.0.s8 %v344
        %v346 = vlaneseq
        %v347 = vshrl.u32 %v346, 7
        %v348 = vsub.s32 %v345, %v347
        %v349 = vrot.slane %v342, %v348
        %v351 = vmul.f32 %v243, %v349
        %v352 = vmul.f32 %v244, %v349
        %355 = vrot.lane.b32.xlu0 %v351, 96
        %v356 = vpop.permute.xlu0 %355
        %357 = vrot.lane.b32.xlu0 %v352, 96
        %v358 = vpop.permute.xlu0 %357
        %v359 = vrot.slane %v356, 4
        %v360 = vrot.slane %v358, 4
        %vm361 = vcmask 1043456
        %v362 = vsel %vm361, %v359, %v360
        %vm363 = vcmask 785408
        %v364 = vsel %vm363, %v356, %v362
        %v366 = vadd.f32 %v339, %v364
        %367 = vset.pattern.permute.xlu0 6
        %368 = vperm.xlu0 %367, %v313
        %v369 = vpop.permute.xlu0 %368
        %v371 = vunpack.c.l.s4 839922192
        %v372 = vunpack.c.0.s8 %v371
        %v373 = vlaneseq
        %v374 = vshrl.u32 %v373, 7
        %v375 = vsub.s32 %v372, %v374
        %v376 = vrot.slane %v369, %v375
        %v378 = vadd.f32 %v366, %v376
        %379 = vset.pattern.permute.xlu0 3
        %380 = vperm.xlu0 %379, %v313
        %v381 = vpop.permute.xlu0 %380
        %v383 = vmul.f32 %v280, %v381
        %v384 = vmul.f32 %v281, %v381
        %385 = vset.pattern.permute.xlu0 4
        %386 = vperm.xlu0 %385, %v313
        %v387 = vpop.permute.xlu0 %386
        %v389 = vunpack.c.l.s4 839922192
        %v390 = vunpack.c.0.s8 %v389
        %v391 = vlaneseq
        %v392 = vshrl.u32 %v391, 7
        %v393 = vsub.s32 %v390, %v392
        %v394 = vrot.slane %v387, %v393
        %v396 = vmul.f32 %v225, %v394
        %v398 = vcombine.high %v396, %v396
        %v400 = vadd.f32 %v383, %v396
        %v401 = vadd.f32 %v384, %v398
        %402 = vset.pattern.permute.xlu0 5
        %403 = vperm.xlu0 %402, %v313
        %v404 = vpop.permute.xlu0 %403
        %v406 = vmul.f32 %v311, %v404
        %v407 = vmul.f32 %v312, %v404
        %v408 = vadd.f32 %v400, %v406
        %v409 = vadd.f32 %v401, %v407
        %410 = vset.pattern.permute.xlu0 7
        %411 = vperm.xlu0 %410, %v313
        %v412 = vpop.permute.xlu0 %411
        %v414 = vadd.f32 %v408, %v412
        %v415 = vadd.f32 %v409, %v412
        %v418 = vcombine.low %v414, %v415
        %v420 = vmax.f32 %v378, %v418
        %421 = vst [vmem:[%s224] sm:$0xff] %v420
        %422 = vset.pattern.permute.xlu0 8
        %423 = vperm.xlu0 %422, %v313
        %v424 = vpop.permute.xlu0 %423
        %v426 = vunpack.c.l.s4 839922192
        %v427 = vunpack.c.0.s8 %v426
        %v428 = vlaneseq
        %v429 = vshrl.u32 %v428, 7
        %v430 = vsub.s32 %v427, %v429
        %v431 = vrot.slane %v424, %v430
        %v433 = vmul.f32 %v243, %v431
        %434 = vset.pattern.permute.xlu0 9
        %435 = vperm.xlu0 %434, %v313
        %v436 = vpop.permute.xlu0 %435
        %v438 = vunpack.c.l.s4 839922192
        %v439 = vunpack.c.0.s8 %v438
        %v440 = vlaneseq
        %v441 = vshrl.u32 %v440, 7
        %v442 = vsub.s32 %v439, %v441
        %v443 = vrot.slane %v436, %v442
        %v445 = vmul.f32 %v225, %v443
        %v446 = vadd.f32 %v433, %v445
        %447 = vset.pattern.permute.xlu0 10
        %448 = vperm.xlu0 %447, %v313
        %v449 = vpop.permute.xlu0 %448
        %v451 = vunpack.c.l.s4 839922192
        %v452 = vunpack.c.0.s8 %v451
        %v453 = vlaneseq
        %v454 = vshrl.u32 %v453, 7
        %v455 = vsub.s32 %v452, %v454
        %v456 = vrot.slane %v449, %v455
        %v458 = vmul.f32 %v243, %v456
        %v459 = vmul.f32 %v244, %v456
        %462 = vrot.lane.b32.xlu0 %v458, 96
        %v463 = vpop.permute.xlu0 %462
        %464 = vrot.lane.b32.xlu0 %v459, 96
        %v465 = vpop.permute.xlu0 %464
        %v466 = vrot.slane %v463, 4
        %v467 = vrot.slane %v465, 4
        %v468 = vsel %vm361, %v466, %v467
        %v469 = vsel %vm363, %v463, %v468
        %v471 = vadd.f32 %v446, %v469
        %472 = vset.pattern.permute.xlu0 14
        %473 = vperm.xlu0 %472, %v313
        %v474 = vpop.permute.xlu0 %473
        %v476 = vunpack.c.l.s4 839922192
        %v477 = vunpack.c.0.s8 %v476
        %v478 = vlaneseq
        %v479 = vshrl.u32 %v478, 7
        %v480 = vsub.s32 %v477, %v479
        %v481 = vrot.slane %v474, %v480
        %v483 = vadd.f32 %v471, %v481
        %484 = vset.pattern.permute.xlu0 11
        %485 = vperm.xlu0 %484, %v313
        %v486 = vpop.permute.xlu0 %485
        %v488 = vmul.f32 %v280, %v486
        %v489 = vmul.f32 %v281, %v486
        %490 = vset.pattern.permute.xlu0 12
        %491 = vperm.xlu0 %490, %v313
        %v492 = vpop.permute.xlu0 %491
        %v494 = vunpack.c.l.s4 839922192
        %v495 = vunpack.c.0.s8 %v494
        %v496 = vlaneseq
        %v497 = vshrl.u32 %v496, 7
        %v498 = vsub.s32 %v495, %v497
        %v499 = vrot.slane %v492, %v498
        %v501 = vmul.f32 %v225, %v499
        %v503 = vcombine.high %v501, %v501
        %v505 = vadd.f32 %v488, %v501
        %v506 = vadd.f32 %v489, %v503
        %507 = vset.pattern.permute.xlu0 13
        %508 = vperm.xlu0 %507, %v313
        %v509 = vpop.permute.xlu0 %508
        %v511 = vmul.f32 %v311, %v509
        %v512 = vmul.f32 %v312, %v509
        %v513 = vadd.f32 %v505, %v511
        %v514 = vadd.f32 %v506, %v512
        %515 = vset.pattern.permute.xlu0 15
        %516 = vperm.xlu0 %515, %v313
        %v517 = vpop.permute.xlu0 %516
        %v519 = vadd.f32 %v513, %v517
        %v520 = vadd.f32 %v514, %v517
        %v523 = vcombine.low %v519, %v520
        %v525 = vmax.f32 %v483, %v523
        %526 = vst [vmem:[%s224 + $0x8] sm:$0xff] %v525
        %s527 = sand.u32 %s118, 1
        %s528 = scalar_lea.sflag [#allocation5], %s527
        %s529 = sand.u32 %s118, 1
        %s530 = smul.addr %s529, 16
        %s531 = scalar_lea.vmem [#allocation8], %s530
        // Predicated region
        $region41: #{tpu_custom_call.1} parent=31 // pred_check
          %p532 = pneg %p128
        $region42: #{tpu_custom_call.1} parent=31 // pred_check_branch
          %534 = sbr.rel (%p532) target = $region44
        $region43: #{tpu_custom_call.1} parent=31 // pred_region
          %s536 = ssub.s32 256, 256
          %537 = vsyncadd %s528, %s536
          %s538 = smul.addr %s26, 4
          %s539 = smul.addr %s25, 4
          %s540 = sadd.s32 %s538, %s539
          %s541 = smul.addr %s540, 64
          %s542 = scalar_lea.hbm %s3, %s541
          %s544 = sshll.u32 %s531, 4
          %s545 = int_to_ptr.vmem [resolvable:$true] %s544
          %547 = dma.vmem_to_hbm [thread:$0]  %s545, 256, %s542, %s528
        $region44: #{tpu_custom_call.1} parent=31 // pred_fallthru
          _
      $region32: #{tpu_custom_call.1} parent=5 // pred_fallthru
        _
      %p548 = scmp.le.s32.totalorder 2, %s16
      // Predicated region
      $region45: #{tpu_custom_call.1} parent=5 // pred_check
        %p549 = pneg %p548
      $region46: #{tpu_custom_call.1} parent=5 // pred_check_branch
        %551 = sbr.rel (%p549) target = $region48
      $region47: #{tpu_custom_call.1} parent=5 // pred_region
        %s552 = ssub.s32 %s16, 2
        // Predicated region
        $region49: #{tpu_custom_call.1} parent=47 // pred_check
          %p553 = pneg %p134
        $region50: #{tpu_custom_call.1} parent=47 // pred_check_branch
          %555 = sbr.rel (%p553) target = $region52
        $region51: #{tpu_custom_call.1} parent=47 // pred_region
          %s556 = sand.u32 %s119, 1
          %s557 = scalar_lea.sflag [#allocation5], %s556
          %s558 = sand.u32 %s119, 1
          %s559 = smul.addr %s558, 16
          %s560 = scalar_lea.vmem [#allocation8], %s559
          %561 = dma.done %s557, 256
        $region52: #{tpu_custom_call.1} parent=47 // pred_fallthru
          _
      $region48: #{tpu_custom_call.1} parent=5 // pred_fallthru
        _
    $region6: #{tpu_custom_call.1} parent=1 // loop_footer
      %s20 = sadd.s32 1, %s16
    $region7: #{tpu_custom_call.1} parent=1 // loop_footer_branch
      %15 = sbr.rel target = $region3
    $region8: #{tpu_custom_call.1} parent=1 // loop_exit
      _
    %562 = vsyncpa [#allocation4], 1
    %s563 = scalar_lea.sflag [#allocation4], 1
    %564 = vsyncpa %s563, 1
    %565 = vsyncpa [#allocation7], 1
    %566 = vsyncpa [#allocation5], 1
    %s567 = scalar_lea.sflag [#allocation5], 1
    %568 = vsyncpa %s567, 1

</llo_original>
